<compile_context>
chip_gen: v5e
topology: v5e:2x2
jax: 0.10.0
libtpu: 0.0.40
codegen_flags: <defaults>
</compile_context>

<pallas_src>
import functools

import jax
import jax.numpy as jnp
from jax.experimental import pallas as pl
from jax.experimental.pallas import tpu as pltpu


# Problems below this many FLOPs go to the fused-XLA fast path unless forced.
_TINY_FLOPS = 1 << 20
# Keep the weight (+bias) fully VMEM-resident below this size.
_RESIDENT_WEIGHT_BYTES = 4 << 20
# Conservative per-call scoped-VMEM cap: safe on v7x (64 MiB/TC) and below.
_VMEM_LIMIT = 32 << 20
# Soft working-set bound used when sizing the batch tile of the resident path.
_RESIDENT_WORKSET_BYTES = 12 << 20


def _round_up(x, m):
    return ((x + m - 1) // m) * m


# ---------------------------------------------------------------------------
# Kernels
# ---------------------------------------------------------------------------

def _resident_kernel(x_ref, w_ref, b_ref, o_ref):
    """Whole-K / whole-A output block: y_tile = x_tile @ W + b.

    x_ref: [tm, F]   w_ref: [F, A] (VMEM-resident)   b_ref: [1, A]   o_ref: [tm, A]
    """
    o_ref[...] = (
        jnp.dot(x_ref[...], w_ref[...], preferred_element_type=jnp.float32)
        + b_ref[...]
    ).astype(o_ref.dtype)


def _tiled_kernel_f32(x_ref, w_ref, b_ref, o_ref):
    """K-tiled matmul accumulating directly into the resident f32 output tile."""
    k = pl.program_id(2)

    @pl.when(k == 0)
    def _():
        o_ref[...] = jnp.zeros_like(o_ref)

    o_ref[...] += jnp.dot(x_ref[...], w_ref[...],
                          preferred_element_type=jnp.float32)

    @pl.when(k == pl.num_programs(2) - 1)
    def _():
        o_ref[...] += b_ref[...]


def _tiled_kernel_acc(x_ref, w_ref, b_ref, o_ref, acc_ref):
    """K-tiled matmul with an f32 scratch accumulator (non-f32 outputs)."""
    k = pl.program_id(2)

    @pl.when(k == 0)
    def _():
        acc_ref[...] = jnp.zeros_like(acc_ref)

    acc_ref[...] += jnp.dot(x_ref[...], w_ref[...],
                            preferred_element_type=jnp.float32)

    @pl.when(k == pl.num_programs(2) - 1)
    def _():
        o_ref[...] = (acc_ref[...] + b_ref[...]).astype(o_ref.dtype)


# ---------------------------------------------------------------------------
# Wrappers
# ---------------------------------------------------------------------------

def _cost(B, F, A, itemsize):
    return pl.CostEstimate(
        flops=2 * B * F * A,
        transcendentals=0,
        bytes_accessed=(B * F + F * A + A + B * A) * itemsize,
    )


def _linear_resident(x, w_t, b2d):
    """Weight stays in VMEM for the whole call; grid only over the batch axis."""
    B, F = x.shape
    _, A = w_t.shape
    itemsize = jnp.dtype(x.dtype).itemsize
    sub = 8 if itemsize >= 4 else 16   # full sublane packing for 2-byte dtypes

    if B <= 512:
        tm = B                        # block == full dim is always legal
    else:
        tm = 512
        while tm > sub and (2 * tm * (F + A) * itemsize + F * A * itemsize
                            > _RESIDENT_WORKSET_BYTES):
            tm //= 2

    grid = (pl.cdiv(B, tm),)          # ragged batch edge -> partial blocks

    return pl.pallas_call(
        _resident_kernel,
        out_shape=jax.ShapeDtypeStruct((B, A), x.dtype),
        grid_spec=pltpu.PrefetchScalarGridSpec(
            num_scalar_prefetch=0,
            grid=grid,
            in_specs=[
                pl.BlockSpec((tm, F), lambda i: (i, 0)),   # x row-tile
                pl.BlockSpec((F, A), lambda i: (0, 0)),    # W: DMA'd once, resident
                pl.BlockSpec((1, A), lambda i: (0, 0)),    # bias: resident
            ],
            out_specs=pl.BlockSpec((tm, A), lambda i: (i, 0)),
        ),
        compiler_params=pltpu.CompilerParams(
            dimension_semantics=("parallel",),
            vmem_limit_bytes=_VMEM_LIMIT,
        ),
        cost_estimate=_cost(B, F, A, itemsize),
    )(x, w_t, b2d)


def _linear_tiled(x, w_t, b2d):
    """General 3-D tiled path for weights too large to keep VMEM-resident."""
    B, F = x.shape
    _, A = w_t.shape
    itemsize = jnp.dtype(x.dtype).itemsize
    sub = 8 if itemsize >= 4 else 16

    # K axis must be exact: pick tk dividing F, zero-padding F up to a multiple
    # of 128 only if needed (zero padding is exact for matmul).
    Fp = _round_up(F, 128)
    tk = 128
    for cand in (1024, 512, 256, 128):
        if Fp % cand == 0:
            tk = cand
            break
    if Fp != F:
        x = jnp.pad(x, ((0, 0), (0, Fp - F)))
        w_t = jnp.pad(w_t, ((0, Fp - F), (0, 0)))

    tm = min(512, _round_up(B, sub))
    tn = min(256, _round_up(A, 128))
    grid = (pl.cdiv(B, tm), pl.cdiv(A, tn), Fp // tk)

    out_is_f32 = x.dtype == jnp.float32
    kernel = _tiled_kernel_f32 if out_is_f32 else _tiled_kernel_acc
    scratch = [] if out_is_f32 else [pltpu.VMEM((tm, tn), jnp.float32)]

    return pl.pallas_call(
        kernel,
        out_shape=jax.ShapeDtypeStruct((B, A), x.dtype),
        grid_spec=pltpu.PrefetchScalarGridSpec(
            num_scalar_prefetch=0,
            grid=grid,
            in_specs=[
                pl.BlockSpec((tm, tk), lambda i, j, k: (i, k)),   # x tile
                pl.BlockSpec((tk, tn), lambda i, j, k: (k, j)),   # W.T tile
                pl.BlockSpec((1, tn), lambda i, j, k: (0, j)),    # bias tile
            ],
            out_specs=pl.BlockSpec((tm, tn), lambda i, j, k: (i, j)),
            scratch_shapes=scratch,
        ),
        compiler_params=pltpu.CompilerParams(
            dimension_semantics=("parallel", "parallel", "arbitrary"),
            vmem_limit_bytes=_VMEM_LIMIT,
        ),
        cost_estimate=_cost(B, F, A, itemsize),
    )(x, w_t, b2d)


def _simple_linear_pallas(x, weight, bias):
    B, F = x.shape
    A, F2 = weight.shape
    assert F == F2, "weight feature dim must match x"
    itemsize = jnp.dtype(x.dtype).itemsize

    # One-time pre-transpose to [F, A]: the kernel then uses a plain jnp.dot
    # (amortized over all batch row-tiles and across calls).
    w_t = weight.T
    b2d = bias.reshape(1, A)

    # Pad only sub-native-tile dims up to one (8, 128) hardware tile.  This is
    # negligible by construction (the dim is smaller than a tile) and keeps the
    # output store lane-dense for tiny A.  Large ragged dims are NOT padded:
    # Pallas partial blocks handle them with masked edge stores.
    Bp = 8 if B < 8 else B
    Fp = 128 if F < 128 else F
    Ap = 128 if A < 128 else A
    if Bp != B or Fp != F:
        x = jnp.pad(x, ((0, Bp - B), (0, Fp - F)))
    if Fp != F or Ap != A:
        w_t = jnp.pad(w_t, ((0, Fp - F), (0, Ap - A)))
    if Ap != A:
        b2d = jnp.pad(b2d, ((0, 0), (0, Ap - A)))

    weight_bytes = Fp * Ap * itemsize
    sub = 8 if itemsize >= 4 else 16
    resident_ok = (
        weight_bytes <= _RESIDENT_WEIGHT_BYTES
        and 2 * sub * (Fp + Ap) * itemsize + weight_bytes <= _RESIDENT_WORKSET_BYTES
    )
    out = _linear_resident(x, w_t, b2d) if resident_ok else _linear_tiled(x, w_t, b2d)

    if Bp != B or Ap != A:
        out = out[:B, :A]
    return out


@functools.partial(jax.jit, static_argnames=("force_pallas",))
def simple_linear(x, weight, bias, *, force_pallas=False):
    """torch.nn.Linear forward: y = x @ weight.T + bias.

    x: [B, F]; weight: [A, F] (torch layout); bias: [A] -> y: [B, A].
    """
    B, F = x.shape
    A = weight.shape[0]
    if not force_pallas and 2 * B * F * A < _TINY_FLOPS:
        # Launch-overhead fast path: a standalone pallas_call is 100% overhead
        # at tiny shapes; let XLA fuse the whole thing.
        return x @ weight.T + bias
    return _simple_linear_pallas(x, weight, bias)


if __name__ == "__main__":
    # Shapes implied by the module: n_features=32, n_actions=8, batch=2.
    n_features, n_actions, batch = 32, 8, 2

    key = jax.random.PRNGKey(0)
    kx, kw, kb = jax.random.split(key, 3)

    x = jax.random.normal(kx, (batch, n_features), dtype=jnp.float32)
    # Deterministic init mimicking nn.Linear's uniform(-1/sqrt(F), 1/sqrt(F)).
    bound = 1.0 / jnp.sqrt(jnp.float32(n_features))
    weight = jax.random.uniform(kw, (n_actions, n_features),
                                minval=-bound, maxval=bound, dtype=jnp.float32)
    bias = jax.random.uniform(kb, (n_actions,),
                              minval=-bound, maxval=bound, dtype=jnp.float32)

    # Exercise the Pallas kernel explicitly (default dispatch would take the
    # tiny-shape XLA fast path at this size).
    out = jax.block_until_ready(simple_linear(x, weight, bias, force_pallas=True))

    ref = x @ weight.T + bias
    assert out.shape == (batch, n_actions)
    assert jnp.allclose(out, ref, atol=1e-5, rtol=1e-5), (out, ref)

    # The dispatching entry point (fast path at this size) must agree as well.
    out_fast = jax.block_until_ready(simple_linear(x, weight, bias))
    assert jnp.allclose(out_fast, ref, atol=1e-5, rtol=1e-5)

    print("KERNEL_OK")
</pallas_src>

<mosaic_0001>
module attributes {stable_mosaic.version = 11 : i64} {
  func.func @_resident_kernel(%arg0: i32, %arg1: memref<8x128xf32, #tpu.memory_space<vmem>>, %arg2: memref<128x128xf32, #tpu.memory_space<vmem>>, %arg3: memref<1x128xf32, #tpu.memory_space<vmem>>, %arg4: memref<8x128xf32, #tpu.memory_space<vmem>>) attributes {dimension_semantics = [#tpu.dimension_semantics<parallel>], iteration_bounds = array<i64: 1>, scalar_prefetch = 0 : i64, scratch_operands = 0 : i64, tpu.core_type = #tpu.core_type<tc>, window_params = [{transform_indices = @transform_0, window_bounds = array<i64: 8, 128>}, {pipeline_mode = #tpu.pipeline_mode<synchronous>, transform_indices = @transform_1, window_bounds = array<i64: 128, 128>}, {pipeline_mode = #tpu.pipeline_mode<synchronous>, transform_indices = @transform_2, window_bounds = array<i64: 1, 128>}, {transform_indices = @transform_3, window_bounds = array<i64: 8, 128>}]} {
    %c0 = arith.constant 0 : index
    %c0_0 = arith.constant 0 : index
    %0 = vector.load %arg1[%c0, %c0_0] : memref<8x128xf32, #tpu.memory_space<vmem>>, vector<8x128xf32>
    %c0_1 = arith.constant 0 : index
    %c0_2 = arith.constant 0 : index
    %1 = vector.load %arg2[%c0_1, %c0_2] : memref<128x128xf32, #tpu.memory_space<vmem>>, vector<128x128xf32>
    %cst = arith.constant dense<0.000000e+00> : vector<8x128xf32>
    %2 = tpu.matmul %0, %1, %cst {dimension_numbers = #tpu.dot_dimension_numbers<[1], [0], [0], [1], [0, 0, 1, 1], [], []>} : vector<8x128xf32>, vector<128x128xf32>, vector<8x128xf32> -> vector<8x128xf32>
    %c0_3 = arith.constant 0 : index
    %c0_4 = arith.constant 0 : index
    %3 = vector.load %arg3[%c0_3, %c0_4] : memref<1x128xf32, #tpu.memory_space<vmem>>, vector<1x128xf32>
    %4 = vector.broadcast %3 : vector<1x128xf32> to vector<8x128xf32>
    %5 = arith.addf %2, %4 : vector<8x128xf32>
    %c0_5 = arith.constant 0 : index
    %c0_6 = arith.constant 0 : index
    %6 = vector.load %arg4[%c0_5, %c0_6] : memref<8x128xf32, #tpu.memory_space<vmem>>, vector<8x128xf32>
    tpu.vector_store %arg4[%c0_5, %c0_6], %5 {strides = array<i32>} : memref<8x128xf32, #tpu.memory_space<vmem>>, vector<8x128xf32>,
    return
  }
  func.func @transform_0(%arg0: i32) -> (i32, i32) {
    %c0_i32 = arith.constant 0 : i32
    %c0_i32_0 = arith.constant 0 : i32
    return %arg0, %c0_i32 : i32, i32
  }
  func.func @transform_1(%arg0: i32) -> (i32, i32) {
    %c0_i32 = arith.constant 0 : i32
    %c0_i32_0 = arith.constant 0 : i32
    %c0_i32_1 = arith.constant 0 : i32
    return %c0_i32, %c0_i32_0 : i32, i32
  }
  func.func @transform_2(%arg0: i32) -> (i32, i32) {
    %c0_i32 = arith.constant 0 : i32
    %c0_i32_0 = arith.constant 0 : i32
    %c0_i32_1 = arith.constant 0 : i32
    return %c0_i32, %c0_i32_0 : i32, i32
  }
  func.func @transform_3(%arg0: i32) -> (i32, i32) {
    %c0_i32 = arith.constant 0 : i32
    %c0_i32_0 = arith.constant 0 : i32
    return %arg0, %c0_i32 : i32, i32
  }
}

</mosaic_0001>

<llo_original>
// kernel: simple_linear.1
$region0: #{simple_linear.1}
  #allocation0 [shape = 'u32[]', space=smem, size = 0x4, offset = 0x4, fixed_abs, tag = 'smem constant byte address 0x4 - core index']
  #allocation1 [shape = 'u32[72,128]{1,0:T(1,128)}', space=vmem, size = 0x9000, scoped, tag = 'internal scratch']
  %s0 = inlined_call_operand.vmem [shape: f32[8,128], index: 0, kind: input, shape index: {}]
  %s1 = inlined_call_operand.vmem [shape: f32[128,128], index: 1, kind: input, shape index: {}]
  %s2 = inlined_call_operand.vmem [shape: f32[1,128], index: 2, kind: input, shape index: {}]
  %s3 = inlined_call_operand.vmem [shape: f32[8,128], index: 3, kind: output, shape index: {}]
  %s4 = sld [smem:[#allocation0]]
  $region22: #{simple_linear.1} parent=0
    _
  %s6 = ssub.s32 1, %s4
  %s7 = scalar_select 0, %s6, %s4
  // Predicated region
  $region2: #{simple_linear.1} parent=0 // pred_check
    _
  $region3: #{simple_linear.1} parent=0 // pred_check_branch
    %9 = sbr.rel (0) target = $region5
  $region4: #{simple_linear.1} parent=0 // pred_region
    _
  $region5: #{simple_linear.1} parent=0 // pred_fallthru
    _
  // Predicated region
  $region6: #{simple_linear.1} parent=0 // pred_check
    _
  $region7: #{simple_linear.1} parent=0 // pred_check_branch
    %11 = sbr.rel (0) target = $region9
  $region8: #{simple_linear.1} parent=0 // pred_region
    _
  $region9: #{simple_linear.1} parent=0 // pred_fallthru
    _
  // Predicated region
  $region10: #{simple_linear.1} parent=0 // pred_check
    _
  $region11: #{simple_linear.1} parent=0 // pred_check_branch
    %13 = sbr.rel (0) target = $region13
  $region12: #{simple_linear.1} parent=0 // pred_region
    _
  $region13: #{simple_linear.1} parent=0 // pred_fallthru
    _
  %v14 = vld [vmem:[%s0] sm:$0xff]
  %v15 = vld [vmem:[%s1] sm:$0xff]
  %v16 = vld [vmem:[%s1 + $0x8] sm:$0xff]
  %v17 = vld [vmem:[%s1 + $0x10] sm:$0xff]
  %v18 = vld [vmem:[%s1 + $0x18] sm:$0xff]
  %v19 = vld [vmem:[%s1 + $0x20] sm:$0xff]
  %v20 = vld [vmem:[%s1 + $0x28] sm:$0xff]
  %v21 = vld [vmem:[%s1 + $0x30] sm:$0xff]
  %v22 = vld [vmem:[%s1 + $0x38] sm:$0xff]
  %v23 = vld [vmem:[%s1 + $0x40] sm:$0xff]
  %v24 = vld [vmem:[%s1 + $0x48] sm:$0xff]
  %v25 = vld [vmem:[%s1 + $0x50] sm:$0xff]
  %v26 = vld [vmem:[%s1 + $0x58] sm:$0xff]
  %v27 = vld [vmem:[%s1 + $0x60] sm:$0xff]
  %v28 = vld [vmem:[%s1 + $0x68] sm:$0xff]
  %v29 = vld [vmem:[%s1 + $0x70] sm:$0xff]
  %v30 = vld [vmem:[%s1 + $0x78] sm:$0xff]
  %v31 = vld [vmem:[%s2] sm:$0x1]
  %v33 = vperm.slane %v31, 0
  %35 = vmatpush.msra.mxu0 %v30
  %36 = vmatpush.msra.mxu0 %v29
  %37 = vmatpush.msra.mxu0 %v28
  %38 = vmatpush.msra.mxu0 %v27
  %39 = vmatpush.msra.mxu0 %v26
  %40 = vmatpush.msra.mxu0 %v25
  %41 = vmatpush.msra.mxu0 %v24
  %42 = vmatpush.msra.mxu0 %v23
  %43 = vmatpush.msra.mxu0 %v22
  %44 = vmatpush.msra.mxu0 %v21
  %45 = vmatpush.msra.mxu0 %v20
  %46 = vmatpush.msra.mxu0 %v19
  %47 = vmatpush.msra.mxu0 %v18
  %48 = vmatpush.msra.mxu0 %v17
  %49 = vmatpush.msra.mxu0 %v16
  %50 = vmatpush.msra.mxu0 %v15
  %51 = vmatmul.f32.gmra.mxu0 %v14
  %v52 = vpop.f32.mrf.mxu0
  %v53 = vadd.f32 %v33, %v52
  %54 = vdwg.mxu0
  %55 = vst [vmem:[%s3] sm:$0xff] %v53
  // Predicated region
  $region14: #{simple_linear.1} parent=0 // pred_check
    _
  $region15: #{simple_linear.1} parent=0 // pred_check_branch
    %57 = sbr.rel (0) target = $region17
  $region16: #{simple_linear.1} parent=0 // pred_region
    _
  $region17: #{simple_linear.1} parent=0 // pred_fallthru
    _
  // Predicated region
  $region18: #{simple_linear.1} parent=0 // pred_check
    _
  $region19: #{simple_linear.1} parent=0 // pred_check_branch
    %59 = sbr.rel (0) target = $region21
  $region20: #{simple_linear.1} parent=0 // pred_region
    _
  $region21: #{simple_linear.1} parent=0 // pred_fallthru
    _

</llo_original>
